<compile_context>
chip_gen: v5e
topology: v5e:2x2
jax: 0.10.0
libtpu: 0.0.40
codegen_flags: <defaults>
</compile_context>

<pallas_src>
import functools

import jax
import jax.numpy as jnp
from jax.experimental import pallas as pl
from jax.experimental.pallas import tpu as pltpu

BN_EPS = 1e-5
H1 = 400           # first hidden width  (Linear -> BatchNorm1d -> ReLU)
H2 = 300           # second hidden width (Linear -> ReLU)
B_TILE_MAX = 256   # batch tile: comfortably under the 16/32 MiB scoped-VMEM defaults
VMEM_LIMIT = 32 * 1024 * 1024


def _round_up(x, m):
    return ((x + m - 1) // m) * m


def _concat_inputs(state_ref, action_ref):
    # In-kernel lane concat so Linear-1 is a single fused K=(S+A) matmul
    # (a split W1 costs two full K-padded MXU passes for no extra useful MACs).
    # Concatenate in f32 (most mature unaligned lane-concat path) and feed the
    # MXU bf16 operands; the casts are on tiny (bt, S)/(bt, A)/(bt, S+A) tiles.
    x = jnp.concatenate(
        [state_ref[...].astype(jnp.float32), action_ref[...].astype(jnp.float32)],
        axis=1)
    return x.astype(jnp.bfloat16)


def _stats_kernel(state_ref, action_ref, w1_ref, stats_ref, *, batch):
    """Pass 1: accumulate sum / sum-of-squares of z = [state|action] @ W1.

    Linear-1's bias is intentionally omitted: with train-mode BatchNorm right
    after it, (h1 - batch_mean) cancels any per-feature constant, and the
    variance is unaffected, so the forward output is mathematically identical.
    """
    bt = state_ref.shape[0]

    @pl.when(pl.program_id(0) == 0)
    def _():
        stats_ref[...] = jnp.zeros_like(stats_ref)

    x = _concat_inputs(state_ref, action_ref)
    z = jnp.dot(x, w1_ref[...], preferred_element_type=jnp.float32)

    if batch % bt != 0:
        # Ragged last tile: rows >= batch contain padding garbage -> exclude
        # them from the batch statistics (select, so even NaN garbage is safe).
        row = pl.program_id(0) * bt + jax.lax.broadcasted_iota(jnp.int32, (bt, 1), 0)
        z = jnp.where(row < batch, z, 0.0)

    stats_ref[0:1, :] += jnp.sum(z, axis=0, keepdims=True)
    stats_ref[1:2, :] += jnp.sum(z * z, axis=0, keepdims=True)


def _forward_kernel(state_ref, action_ref, w1_ref, w2_ref, pack_ref, stats_ref,
                    out_ref, *, batch):
    """Pass 2: normalize with the batch stats and run the rest of the MLP."""
    pack = pack_ref[...]                       # (5, H1) f32
    gamma = pack[0:1, :]                       # (1, H1)
    beta = pack[1:2, :]                        # (1, H1)
    b2 = pack[2:3, 0:H2]                       # (1, H2)
    w3_row = pack[3:4, 0:H2]                   # (1, H2)
    b3 = pack[4:5, 0:1]                        # (1, 1)

    # Fold BatchNorm (and the cancelled Linear-1 bias) into one scale/shift.
    # TODO(synk): E[x^2]-mean^2 can lose precision when |mean| >> std; f32
    # accumulation is within RL-critic tolerance, use a centered/Welford pass
    # if tighter parity with the PyTorch reference is ever required.
    inv_b = 1.0 / float(batch)
    mean = stats_ref[0:1, :] * inv_b
    var = jnp.maximum(stats_ref[1:2, :] * inv_b - mean * mean, 0.0)
    scale = gamma * jax.lax.rsqrt(var + BN_EPS)
    shift = beta - mean * scale

    # Linear 1 (fused concat, bias cancelled by BN) -> BatchNorm -> ReLU.
    x = _concat_inputs(state_ref, action_ref)
    z = jnp.dot(x, w1_ref[...], preferred_element_type=jnp.float32)
    h1 = jnp.maximum(z * scale + shift, 0.0)

    # Linear 2 + ReLU (bf16 operands into the MXU, f32 accumulation).
    h2 = jnp.dot(h1.astype(jnp.bfloat16), w2_ref[...],
                 preferred_element_type=jnp.float32) + b2
    h2 = jnp.maximum(h2, 0.0)

    # Linear 3 (out_features=1): VPU multiply + lane reduction.
    q = jnp.sum(h2 * w3_row, axis=1, keepdims=True) + b3
    out_ref[...] = q.astype(out_ref.dtype)


def critic_forward(state, action, params):
    B, S = state.shape
    A = action.shape[1]
    w1, w2, pack = params["w1"], params["w2"], params["pack"]

    # bf16 inputs: halves the only per-row HBM->VMEM traffic.
    state = state.astype(jnp.bfloat16)
    action = action.astype(jnp.bfloat16)

    bt = min(B_TILE_MAX, _round_up(B, 8))
    nt = pl.cdiv(B, bt)

    state_spec = pl.BlockSpec((bt, S), lambda i: (i, 0))
    action_spec = pl.BlockSpec((bt, A), lambda i: (i, 0))

    def resident(shape):
        # Whole-array block with a constant index_map -> stays VMEM-resident
        # across grid steps (no re-DMA).
        return pl.BlockSpec(shape, lambda i: (0, 0))

    # ---- Pass 1: batch statistics (reduction over the batch grid axis). ----
    stats = pl.pallas_call(
        functools.partial(_stats_kernel, batch=B),
        grid=(nt,),
        in_specs=[state_spec, action_spec, resident((S + A, H1))],
        out_specs=resident((2, H1)),
        out_shape=jax.ShapeDtypeStruct((2, H1), jnp.float32),
        compiler_params=pltpu.CompilerParams(
            dimension_semantics=("arbitrary",), vmem_limit_bytes=VMEM_LIMIT),
    )(state, action, w1)

    # ---- Pass 2: normalize + MLP (independent tiles -> megacore parallel). --
    return pl.pallas_call(
        functools.partial(_forward_kernel, batch=B),
        grid=(nt,),
        in_specs=[state_spec, action_spec, resident((S + A, H1)),
                  resident((H1, H2)), resident((5, H1)), resident((2, H1))],
        out_specs=pl.BlockSpec((bt, 1), lambda i: (i, 0)),
        out_shape=jax.ShapeDtypeStruct((B, 1), jnp.float32),
        compiler_params=pltpu.CompilerParams(
            dimension_semantics=("parallel",), vmem_limit_bytes=VMEM_LIMIT),
    )(state, action, w1, w2, pack, stats)


def pack_params(state_dim, w1, b1, gamma, beta, w2, b2, w3, b3):
    """Repack module parameters into the kernel layout.

    w1: (state_dim+action_dim, 400), w2: (400, 300), w3: (300, 1) — already
    transposed to (in, out) for x @ W (PyTorch stores (out, in)). b1 is accepted
    for interface parity but unused: train-mode BatchNorm subtracts the batch
    mean, which cancels the Linear-1 bias exactly.
    """
    del state_dim, b1
    pack = jnp.zeros((5, H1), jnp.float32)
    pack = pack.at[0, :].set(gamma.astype(jnp.float32))
    pack = pack.at[1, :].set(beta.astype(jnp.float32))
    pack = pack.at[2, :H2].set(b2.astype(jnp.float32))
    pack = pack.at[3, :H2].set(w3[:, 0].astype(jnp.float32))
    pack = pack.at[4, 0].set(b3.reshape(()).astype(jnp.float32))
    return {
        "w1": w1.astype(jnp.bfloat16),   # (S+A, 400) fused, bf16 for the MXU
        "w2": w2.astype(jnp.bfloat16),   # (400, 300)
        "pack": pack,                    # (5, 400) f32, one small DMA
    }


def init_params(key, state_dim, action_dim):
    """Deterministic init mirroring the module's parameter shapes."""
    d_in = state_dim + action_dim
    k1, k2, k3, k4, k5, k6 = jax.random.split(key, 6)

    def uinit(k, shape, fan_in):
        bound = 1.0 / float(fan_in) ** 0.5
        return jax.random.uniform(k, shape, jnp.float32, -bound, bound)

    w1 = uinit(k1, (d_in, 400), d_in)
    b1 = uinit(k2, (400,), d_in)
    gamma = jnp.ones((400,), jnp.float32)    # BatchNorm1d weight
    beta = jnp.zeros((400,), jnp.float32)    # BatchNorm1d bias
    w2 = uinit(k3, (400, 300), 400)
    b2 = uinit(k4, (300,), 400)
    w3 = uinit(k5, (300, 1), 300)
    b3 = uinit(k6, (1,), 300)
    return pack_params(state_dim, w1, b1, gamma, beta, w2, b2, w3, b3)


if __name__ == "__main__":
    key = jax.random.PRNGKey(0)
    k_state, k_action, k_params = jax.random.split(key, 3)

    batch, state_dim, action_dim = 8, 16, 8
    state = jax.random.normal(k_state, (batch, state_dim), jnp.float32)
    action = jax.random.normal(k_action, (batch, action_dim), jnp.float32)
    params = init_params(k_params, state_dim, action_dim)

    q = critic_forward(state, action, params)
    jax.block_until_ready(q)
    assert q.shape == (batch, 1) and q.dtype == jnp.float32
    assert bool(jnp.all(jnp.isfinite(q)))
    print("KERNEL_OK")
</pallas_src>

<mosaic_0001>
module attributes {stable_mosaic.version = 11 : i64} {
  func.func @_stats_kernel(%arg0: i32, %arg1: memref<8x16xbf16, #tpu.memory_space<vmem>>, %arg2: memref<8x8xbf16, #tpu.memory_space<vmem>>, %arg3: memref<24x400xbf16, #tpu.memory_space<vmem>>, %arg4: memref<2x400xf32, #tpu.memory_space<vmem>>) attributes {dimension_semantics = [#tpu.dimension_semantics<arbitrary>], iteration_bounds = array<i64: 1>, scalar_prefetch = 0 : i64, scratch_operands = 0 : i64, tpu.core_type = #tpu.core_type<tc>, window_params = [{transform_indices = @transform_0, window_bounds = array<i64: 8, 16>}, {transform_indices = @transform_1, window_bounds = array<i64: 8, 8>}, {pipeline_mode = #tpu.pipeline_mode<synchronous>, transform_indices = @transform_2, window_bounds = array<i64: 24, 400>}, {pipeline_mode = #tpu.pipeline_mode<synchronous>, transform_indices = @transform_3, window_bounds = array<i64: 2, 400>}]} {
    %c0_i32 = arith.constant 0 : i32
    %0 = arith.cmpi eq, %arg0, %c0_i32 : i32
    %1 = arith.extui %0 : i1 to i32
    %c0_i32_0 = arith.constant 0 : i32
    %2 = arith.cmpi ne, %1, %c0_i32_0 : i32
    scf.if %2 {
      %cst_15 = arith.constant 0.000000e+00 : f32
      %22 = vector.broadcast %cst_15 : f32 to vector<2x400xf32>
      %c0_16 = arith.constant 0 : index
      %c0_17 = arith.constant 0 : index
      %23 = vector.load %arg4[%c0_16, %c0_17] : memref<2x400xf32, #tpu.memory_space<vmem>>, vector<2x400xf32>
      tpu.vector_store %arg4[%c0_16, %c0_17], %22 {strides = array<i32>} : memref<2x400xf32, #tpu.memory_space<vmem>>, vector<2x400xf32>,
    } else {
    }
    %c0 = arith.constant 0 : index
    %c0_1 = arith.constant 0 : index
    %3 = vector.load %arg1[%c0, %c0_1] : memref<8x16xbf16, #tpu.memory_space<vmem>>, vector<8x16xbf16>
    %4 = arith.extf %3 : vector<8x16xbf16> to vector<8x16xf32>
    %c0_2 = arith.constant 0 : index
    %c0_3 = arith.constant 0 : index
    %5 = vector.load %arg2[%c0_2, %c0_3] : memref<8x8xbf16, #tpu.memory_space<vmem>>, vector<8x8xbf16>
    %6 = arith.extf %5 : vector<8x8xbf16> to vector<8x8xf32>
    %7 = tpu.concatenate %4, %6 in 1 : vector<8x16xf32>, vector<8x8xf32> -> vector<8x24xf32>
    %8 = arith.truncf %7 : vector<8x24xf32> to vector<8x24xbf16>
    %c0_4 = arith.constant 0 : index
    %c0_5 = arith.constant 0 : index
    %9 = vector.load %arg3[%c0_4, %c0_5] : memref<24x400xbf16, #tpu.memory_space<vmem>>, vector<24x400xbf16>
    %cst = arith.constant dense<0.000000e+00> : vector<8x400xf32>
    %10 = tpu.matmul %8, %9, %cst {dimension_numbers = #tpu.dot_dimension_numbers<[1], [0], [0], [1], [0, 0, 1, 1], [], []>} : vector<8x24xbf16>, vector<24x400xbf16>, vector<8x400xf32> -> vector<8x400xf32>
    %c0_6 = arith.constant 0 : index
    %c0_7 = arith.constant 0 : index
    %11 = vector.load %arg4[%c0_6, %c0_7] : memref<2x400xf32, #tpu.memory_space<vmem>>, vector<1x400xf32>
    %cst_8 = arith.constant dense<0.000000e+00> : vector<400xf32>
    %12 = vector.multi_reduction <add>, %10, %cst_8 [0] : vector<8x400xf32> to vector<400xf32>
    %13 = vector.shape_cast %12 : vector<400xf32> to vector<1x400xf32>
    %14 = arith.addf %11, %13 : vector<1x400xf32>
    %c0_9 = arith.constant 0 : index
    %c0_10 = arith.constant 0 : index
    %15 = vector.load %arg4[%c0_9, %c0_10] : memref<2x400xf32, #tpu.memory_space<vmem>>, vector<1x400xf32>
    tpu.vector_store %arg4[%c0_9, %c0_10], %14 {strides = array<i32>} : memref<2x400xf32, #tpu.memory_space<vmem>>, vector<1x400xf32>,
    %c1 = arith.constant 1 : index
    %c0_11 = arith.constant 0 : index
    %16 = vector.load %arg4[%c1, %c0_11] : memref<2x400xf32, #tpu.memory_space<vmem>>, vector<1x400xf32>
    %17 = arith.mulf %10, %10 : vector<8x400xf32>
    %cst_12 = arith.constant dense<0.000000e+00> : vector<400xf32>
    %18 = vector.multi_reduction <add>, %17, %cst_12 [0] : vector<8x400xf32> to vector<400xf32>
    %19 = vector.shape_cast %18 : vector<400xf32> to vector<1x400xf32>
    %20 = arith.addf %16, %19 : vector<1x400xf32>
    %c1_13 = arith.constant 1 : index
    %c0_14 = arith.constant 0 : index
    %21 = vector.load %arg4[%c1_13, %c0_14] : memref<2x400xf32, #tpu.memory_space<vmem>>, vector<1x400xf32>
    tpu.vector_store %arg4[%c1_13, %c0_14], %20 {strides = array<i32>} : memref<2x400xf32, #tpu.memory_space<vmem>>, vector<1x400xf32>,
    return
  }
  func.func @transform_0(%arg0: i32) -> (i32, i32) {
    %c0_i32 = arith.constant 0 : i32
    %c0_i32_0 = arith.constant 0 : i32
    return %arg0, %c0_i32 : i32, i32
  }
  func.func @transform_1(%arg0: i32) -> (i32, i32) {
    %c0_i32 = arith.constant 0 : i32
    %c0_i32_0 = arith.constant 0 : i32
    return %arg0, %c0_i32 : i32, i32
  }
  func.func @transform_2(%arg0: i32) -> (i32, i32) {
    %c0_i32 = arith.constant 0 : i32
    %c0_i32_0 = arith.constant 0 : i32
    %c0_i32_1 = arith.constant 0 : i32
    return %c0_i32, %c0_i32_0 : i32, i32
  }
  func.func @transform_3(%arg0: i32) -> (i32, i32) {
    %c0_i32 = arith.constant 0 : i32
    %c0_i32_0 = arith.constant 0 : i32
    %c0_i32_1 = arith.constant 0 : i32
    return %c0_i32, %c0_i32_0 : i32, i32
  }
}

</mosaic_0001>

<llo_original>
// kernel: tpu_custom_call.1
$region0: #{tpu_custom_call.1}
  #allocation0 [shape = 'u32[]', space=smem, size = 0x4, offset = 0x4, fixed_abs, tag = 'smem constant byte address 0x4 - core index']
  #allocation1 [shape = 'u32[72,128]{1,0:T(1,128)}', space=vmem, size = 0x9000, scoped, tag = 'internal scratch']
  %s0 = inlined_call_operand.hbm [shape: bf16[8,16], index: 0, kind: input, shape index: {}]
  %s1 = inlined_call_operand.hbm [shape: bf16[8,8], index: 1, kind: input, shape index: {}]
  %s2 = inlined_call_operand.hbm [shape: bf16[24,400], index: 2, kind: input, shape index: {}]
  %s3 = inlined_call_operand.hbm [shape: f32[2,400], index: 3, kind: output, shape index: {}]
  %s4 = sld [smem:[#allocation0]]
  $region38: #{tpu_custom_call.1} parent=0
    _
  %s6 = ssub.s32 1, %s4
  %s7 = scalar_select 0, %s6, %s4
  $region1: #{tpu_custom_call.1} parent=0
    #allocation2 [shape = 'u8[2048]{0}', space=vmem, size = 0x800, scoped, tag = 'input window, operand 0, single buffered']
    #allocation3 [shape = 's32[1]{0}', space=sflag, size = 0x4, scoped, tag = 'scoped memory for tpu_custom_call.1']
    #allocation4 [shape = 's32[1]{0}', space=sflag, size = 0x4, scoped, tag = 'scoped memory for tpu_custom_call.1']
    #allocation5 [shape = 'u8[2048]{0}', space=vmem, size = 0x800, scoped, tag = 'input window, operand 1, single buffered']
    #allocation6 [shape = 's32[1]{0}', space=sflag, size = 0x4, scoped, tag = 'scoped memory for tpu_custom_call.1']
    #allocation7 [shape = 'u8[24576]{0}', space=vmem, size = 0x6000, scoped, tag = 'input window, operand 2, single buffered']
    #allocation8 [shape = 'u8[4096]{0}', space=vmem, size = 0x1000, scoped, tag = 'output window, operand 0, single buffered']
    %8 = vsyncpa [#allocation3], 0
    %9 = vsyncpa [#allocation6], 0
    %10 = vsyncpa [#allocation4], 0
    // Predicated region
    $region2: #{tpu_custom_call.1} parent=1 // pred_check
      _
    $region3: #{tpu_custom_call.1} parent=1 // pred_check_branch
      %12 = sbr.rel (0) target = $region5
    $region4: #{tpu_custom_call.1} parent=1 // pred_region
      %14 = vsyncadd [#allocation3], 0
      %s16 = sshll.u32 %s0, 4
      %s17 = int_to_ptr.hbm [resolvable:$true] %s16
      %s18 = sshll.u32 [#allocation2], 4
      %s19 = int_to_ptr.vmem [resolvable:$true] %s18
      %21 = dma.hbm_to_vmem [thread:$0]  %s17, 64, %s19, [#allocation3]
    $region5: #{tpu_custom_call.1} parent=1 // pred_fallthru
      _
    // Predicated region
    $region6: #{tpu_custom_call.1} parent=1 // pred_check
      _
    $region7: #{tpu_custom_call.1} parent=1 // pred_check_branch
      %23 = sbr.rel (0) target = $region9
    $region8: #{tpu_custom_call.1} parent=1 // pred_region
      %25 = vsyncadd [#allocation6], 0
      %s27 = sshll.u32 %s1, 4
      %s28 = int_to_ptr.hbm [resolvable:$true] %s27
      %s29 = sshll.u32 [#allocation5], 4
      %s30 = int_to_ptr.vmem [resolvable:$true] %s29
      %32 = dma.hbm_to_vmem [thread:$0]  %s28, 64, %s30, [#allocation6]
    $region9: #{tpu_custom_call.1} parent=1 // pred_fallthru
      _
    // Predicated region
    $region10: #{tpu_custom_call.1} parent=1 // pred_check
      _
    $region11: #{tpu_custom_call.1} parent=1 // pred_check_branch
      %34 = sbr.rel (0) target = $region13
    $region12: #{tpu_custom_call.1} parent=1 // pred_region
      %36 = vsyncadd [#allocation6], 0
      %s37 = sshll.u32 %s2, 4
      %s38 = int_to_ptr.hbm [resolvable:$true] %s37
      %s39 = sshll.u32 [#allocation7], 4
      %s40 = int_to_ptr.vmem [resolvable:$true] %s39
      %45 = dma.hbm_to_vmem [thread:$0]  %s38, 768, %s40, [#allocation6], 256, 256, 16
    $region13: #{tpu_custom_call.1} parent=1 // pred_fallthru
      _
    // Predicated region
    $region14: #{tpu_custom_call.1} parent=1 // pred_check
      _
    $region15: #{tpu_custom_call.1} parent=1 // pred_check_branch
      %47 = sbr.rel (0) target = $region17
    $region16: #{tpu_custom_call.1} parent=1 // pred_region
      %49 = dma.done [#allocation3], 64
    $region17: #{tpu_custom_call.1} parent=1 // pred_fallthru
      _
    // Predicated region
    $region18: #{tpu_custom_call.1} parent=1 // pred_check
      _
    $region19: #{tpu_custom_call.1} parent=1 // pred_check_branch
      %51 = sbr.rel (0) target = $region21
    $region20: #{tpu_custom_call.1} parent=1 // pred_region
      %53 = dma.done [#allocation6], 64
    $region21: #{tpu_custom_call.1} parent=1 // pred_fallthru
      _
    // Predicated region
    $region22: #{tpu_custom_call.1} parent=1 // pred_check
      _
    $region23: #{tpu_custom_call.1} parent=1 // pred_check_branch
      %55 = sbr.rel (0) target = $region25
    $region24: #{tpu_custom_call.1} parent=1 // pred_region
      %57 = dma.done [#allocation6], 768
    $region25: #{tpu_custom_call.1} parent=1 // pred_fallthru
      _
    %p59 = scmp.eq.s32.totalorder 0, 0
    // Predicated region
    $region26: #{tpu_custom_call.1} parent=1 // pred_check
      %p60 = pneg %p59
    $region27: #{tpu_custom_call.1} parent=1 // pred_check_branch
      %62 = sbr.rel (%p60) target = $region29
    $region28: #{tpu_custom_call.1} parent=1 // pred_region
      %vm63 = vcmask 1041408
      %vm64 = vcmask 1043458
      %vm65 = vmor %vm64, %vm63
      %vm66 = vcmask 1045508
      %vm67 = vmor %vm66, %vm65
      %vm68 = vcmask 130054
      %vm69 = vmor %vm68, %vm67
      %70 = vst.msk [vmem:[#allocation8] sm:$0xff] %vm69, 0.0
    $region29: #{tpu_custom_call.1} parent=1 // pred_fallthru
      _
    %v71 = vld [vmem:[#allocation2] sm:$0xf]
    %v72 = vunpack.c.l.bf16 %v71
    %v73 = vld [vmem:[#allocation5] sm:$0xf]
    %v74 = vunpack.c.l.bf16 %v73
    %76 = vrot.lane.b32.xlu0 %v74, 16
    %v77 = vpop.permute.xlu0 %76
    %vm79 = vcmask 130048
    %v80 = vsel %vm79, %v72, %v77
    %v81 = vpack.c.bf16 %v80, %v80
    %v82 = vld [vmem:[#allocation7] sm:$0xff]
    %v83 = vld [vmem:[#allocation7 + $0x8] sm:$0xff]
    %v84 = vld [vmem:[#allocation7 + $0x10] sm:$0xff]
    %v85 = vld [vmem:[#allocation7 + $0x18] sm:$0xff]
    %v86 = vld [vmem:[#allocation7 + $0x20] sm:$0xff]
    %v87 = vld [vmem:[#allocation7 + $0x28] sm:$0xff]
    %v94 = vunpack.c.l.b16 %v82
    %v95 = vunpack.c.h.b16 %v82
    %v96 = vunpack.c.l.b16 %v83
    %v97 = vunpack.c.h.b16 %v83
    %v98 = vunpack.c.l.b16 %v84
    %v99 = vunpack.c.h.b16 %v84
    %v100 = vunpack.c.l.b16 %v85
    %v101 = vunpack.c.h.b16 %v85
    %v102 = vunpack.c.l.b16 %v86
    %v103 = vunpack.c.h.b16 %v86
    %v104 = vunpack.c.l.b16 %v87
    %v105 = vunpack.c.h.b16 %v87
    %v106 = vpack.c.b16 %v98, %v94
    %v107 = vpack.c.b16 %v99, %v95
    %v108 = vpack.c.b16 %v100, %v96
    %v109 = vpack.c.b16 %v101, %v97
    %v110 = vpack.c.b16 %v102, %v102
    %v111 = vpack.c.b16 %v103, %v103
    %v112 = vpack.c.b16 %v104, %v104
    %v113 = vpack.c.b16 %v105, %v105
    %vm118 = vcmask 195584
    %v120 = vsel %vm118, %v81, 0
    %vm122 = vcmask 1043456
    %v124 = vsel %vm122, %v110, 0
    %v127 = vsel %vm122, %v111, 0
    %v130 = vsel %vm122, %v112, 0
    %v133 = vsel %vm122, %v113, 0
    %135 = vmatpush.bf16.msra.mxu0 0
    %136 = vmatpush.bf16.msra.mxu0 0
    %137 = vmatpush.bf16.msra.mxu0 0
    %138 = vmatpush.bf16.msra.mxu0 0
    %139 = vmatpush.bf16.msra.mxu0 0
    %140 = vmatpush.bf16.msra.mxu0 0
    %141 = vmatpush.bf16.msra.mxu0 %v124
    %142 = vmatpush.bf16.msra.mxu0 %v106
    %143 = vmatmul.bf16.gmra.mxu0 %v120
    %v144 = vpop.f32.mrf.mxu0
    %v145 = vadd.f32 0.0, %v144
    %v146 = vpop.f32.mrf.mxu0
    %147 = vdwg.mxu0
    %148 = vmatpush.bf16.msra.mxu0 0
    %149 = vmatpush.bf16.msra.mxu0 0
    %150 = vmatpush.bf16.msra.mxu0 0
    %151 = vmatpush.bf16.msra.mxu0 0
    %152 = vmatpush.bf16.msra.mxu0 0
    %153 = vmatpush.bf16.msra.mxu0 0
    %154 = vmatpush.bf16.msra.mxu0 %v127
    %155 = vmatpush.bf16.msra.mxu0 %v107
    %156 = vmatmul.bf16.gmra.mxu0 %v120
    %v157 = vpop.f32.mrf.mxu0
    %v158 = vadd.f32 0.0, %v157
    %v159 = vpop.f32.mrf.mxu0
    %160 = vdwg.mxu0
    %161 = vmatpush.bf16.msra.mxu0 0
    %162 = vmatpush.bf16.msra.mxu0 0
    %163 = vmatpush.bf16.msra.mxu0 0
    %164 = vmatpush.bf16.msra.mxu0 0
    %165 = vmatpush.bf16.msra.mxu0 0
    %166 = vmatpush.bf16.msra.mxu0 0
    %167 = vmatpush.bf16.msra.mxu0 %v130
    %168 = vmatpush.bf16.msra.mxu0 %v108
    %169 = vmatmul.bf16.gmra.mxu0 %v120
    %v170 = vpop.f32.mrf.mxu0
    %v171 = vadd.f32 0.0, %v170
    %v172 = vpop.f32.mrf.mxu0
    %173 = vdwg.mxu0
    %174 = vmatpush.bf16.msra.mxu0 0
    %175 = vmatpush.bf16.msra.mxu0 0
    %176 = vmatpush.bf16.msra.mxu0 0
    %177 = vmatpush.bf16.msra.mxu0 0
    %178 = vmatpush.bf16.msra.mxu0 0
    %179 = vmatpush.bf16.msra.mxu0 0
    %180 = vmatpush.bf16.msra.mxu0 %v133
    %181 = vmatpush.bf16.msra.mxu0 %v109
    %182 = vmatmul.bf16.gmra.mxu0 %v120
    %v183 = vpop.f32.mrf.mxu0
    %v184 = vadd.f32 0.0, %v183
    %v185 = vpop.f32.mrf.mxu0
    %186 = vdwg.mxu0
    %v187 = vld [vmem:[#allocation8] ss:$2 sm:$0xf]
    %v188 = vrot.slane %v145, 4
    %v189 = vadd.f32 %v145, %v188
    %v190 = vrot.slane %v189, 2
    %v191 = vadd.f32 %v189, %v190
    %v192 = vrot.slane %v191, 1
    %v193 = vadd.f32 %v191, %v192
    %v194 = vrot.slane %v158, 4
    %v195 = vadd.f32 %v158, %v194
    %v196 = vrot.slane %v195, 2
    %v197 = vadd.f32 %v195, %v196
    %v198 = vrot.slane %v197, 1
    %v199 = vadd.f32 %v197, %v198
    %v200 = vrot.slane %v171, 4
    %v201 = vadd.f32 %v171, %v200
    %v202 = vrot.slane %v201, 2
    %v203 = vadd.f32 %v201, %v202
    %v204 = vrot.slane %v203, 1
    %v205 = vadd.f32 %v203, %v204
    %v206 = vsel %vm79, %v184, 0.0
    %v207 = vrot.slane %v206, 4
    %v208 = vadd.f32 %v206, %v207
    %v209 = vrot.slane %v208, 2
    %v210 = vadd.f32 %v208, %v209
    %v211 = vrot.slane %v210, 1
    %v212 = vadd.f32 %v210, %v211
    %v217 = vrot.slane %v199, 7
    %v218 = vrot.slane %v205, 6
    %v219 = vrot.slane %v212, 5
    %vm220 = vcmask 1040384
    %v221 = vsel %vm220, %v193, %v217
    %vm222 = vcmask 1042434
    %v223 = vsel %vm222, %v218, %v219
    %vm224 = vcmask 1041408
    %v225 = vsel %vm224, %v221, %v223
    %v227 = vadd.f32 %v187, %v225
    %v228 = vlaneseq
    %vm229 = vcmp.ge.s32.totalorder %v228, 0
    %vm230 = vcmp.lt.s32.totalorder %v228, 400
    %vm231 = vmand %vm229, %vm230
    %232 = vst.msk [vmem:[#allocation8] ss:$2 sm:$0xf] %vm231, %v227
    %s233 = scalar_lea.vmem [#allocation8], 1
    %v234 = vld [vmem:[%s233] ss:$2 sm:$0xf]
    %v235 = vmul.f32 %v145, %v145
    %v236 = vmul.f32 %v158, %v158
    %v237 = vmul.f32 %v171, %v171
    %v238 = vmul.f32 %v184, %v184
    %v239 = vrot.slane %v235, 4
    %v240 = vadd.f32 %v235, %v239
    %v241 = vrot.slane %v240, 2
    %v242 = vadd.f32 %v240, %v241
    %v243 = vrot.slane %v242, 1
    %v244 = vadd.f32 %v242, %v243
    %v245 = vrot.slane %v236, 4
    %v246 = vadd.f32 %v236, %v245
    %v247 = vrot.slane %v246, 2
    %v248 = vadd.f32 %v246, %v247
    %v249 = vrot.slane %v248, 1
    %v250 = vadd.f32 %v248, %v249
    %v251 = vrot.slane %v237, 4
    %v252 = vadd.f32 %v237, %v251
    %v253 = vrot.slane %v252, 2
    %v254 = vadd.f32 %v252, %v253
    %v255 = vrot.slane %v254, 1
    %v256 = vadd.f32 %v254, %v255
    %v257 = vsel %vm79, %v238, 0.0
    %v258 = vrot.slane %v257, 4
    %v259 = vadd.f32 %v257, %v258
    %v260 = vrot.slane %v259, 2
    %v261 = vadd.f32 %v259, %v260
    %v262 = vrot.slane %v261, 1
    %v263 = vadd.f32 %v261, %v262
    %v268 = vrot.slane %v250, 7
    %v269 = vrot.slane %v256, 6
    %v270 = vrot.slane %v263, 5
    %v271 = vsel %vm220, %v244, %v268
    %v272 = vsel %vm222, %v269, %v270
    %v273 = vsel %vm224, %v271, %v272
    %v275 = vadd.f32 %v234, %v273
    %276 = vst.msk [vmem:[%s233] ss:$2 sm:$0xf] %vm231, %v275
    // Predicated region
    $region30: #{tpu_custom_call.1} parent=1 // pred_check
      _
    $region31: #{tpu_custom_call.1} parent=1 // pred_check_branch
      %278 = sbr.rel (0) target = $region33
    $region32: #{tpu_custom_call.1} parent=1 // pred_region
      %280 = vsyncadd [#allocation4], 0
      %s282 = sshll.u32 [#allocation8], 4
      %s283 = int_to_ptr.vmem [resolvable:$true] %s282
      %s284 = sshll.u32 %s3, 4
      %s285 = int_to_ptr.hbm [resolvable:$true] %s284
      %287 = dma.vmem_to_hbm [thread:$0]  %s283, 128, %s285, [#allocation4]
    $region33: #{tpu_custom_call.1} parent=1 // pred_fallthru
      _
    // Predicated region
    $region34: #{tpu_custom_call.1} parent=1 // pred_check
      _
    $region35: #{tpu_custom_call.1} parent=1 // pred_check_branch
      %289 = sbr.rel (0) target = $region37
    $region36: #{tpu_custom_call.1} parent=1 // pred_region
      %291 = dma.done [#allocation4], 128
    $region37: #{tpu_custom_call.1} parent=1 // pred_fallthru
      _
    %292 = vsyncpa [#allocation3], 1
    %293 = vsyncpa [#allocation6], 1
    %294 = vsyncpa [#allocation4], 1

</llo_original>
